<compile_context>
chip_gen: v7x
topology: tpu7x:2x2x1
jax: 0.10.0
libtpu: 0.0.40
codegen_flags: <defaults>
</compile_context>

<pallas_src>
import functools

import jax
import jax.numpy as jnp
import numpy as np
from jax.experimental import pallas as pl
from jax.experimental.pallas import tpu as pltpu

_VOCAB_PAD = 512  # pad vocab so the logits matmul gets wide lane-dense output tiles


# ----------------------------------------------------------------------------
# helpers
# ----------------------------------------------------------------------------
def _round_up(x, m):
    return (x + m - 1) // m * m


def _choose_tile(dim, pref, align):
    """Largest tile <= pref that divides dim and is a multiple of align, else full dim."""
    if dim <= pref:
        return dim
    if dim % align != 0:
        return dim  # fall back to a full-extent block (valid per the (8,128) rule)
    t = (pref // align) * align
    while t >= align:
        if dim % t == 0:
            return t
        t -= align
    return dim


@functools.lru_cache(maxsize=None)
def _vmem_limit():
    """~3/4 of physical VMEM, capped; conservative fallback if query fails."""
    cap = 128 * 1024 * 1024
    try:
        cap = int(pltpu.get_tpu_info().vmem_capacity_bytes)
    except Exception:
        cap = 64 * 1024 * 1024
    return max(32 * 1024 * 1024, min(100 * 1024 * 1024, (cap * 3) // 4))


# ----------------------------------------------------------------------------
# Generic fused linear kernel:
#   y = [LayerNorm(x)] @ W  (+ b)  (+ GELU)  (+ residual)
# Grid: (M/tm, N/tn [, K/tk]).
#   * K tiling uses a VMEM f32 accumulator (P3 pattern).
#   * The LN prologue is computed once per row tile into a VMEM scratch at j == 0 and
#     reused for every output-column tile j > 0 (column axis marked "arbitrary" so it
#     is never sharded across cores).
# ----------------------------------------------------------------------------
def _make_linear_kernel(*, nk, has_ln, has_bias, has_res, act):
    def kernel(*refs):
        if has_ln or nk > 1:
            *ins, o_ref, s_ref = refs      # s_ref: LN scratch (tm,K) OR f32 accumulator (tm,tn)
        else:
            *ins, o_ref = refs
            s_ref = None
        it = iter(ins)
        x_ref = next(it)
        g_ref = next(it) if has_ln else None
        beta_ref = next(it) if has_ln else None
        w_ref = next(it)
        b_ref = next(it) if has_bias else None
        res_ref = next(it) if has_res else None

        if has_ln:
            # torch LayerNorm semantics: compute in fp32, cast back to x.dtype before matmul.
            # Hoisted: only recomputed when the row tile changes (j == 0).
            @pl.when(pl.program_id(1) == 0)
            def _ln():
                x32 = x_ref[...].astype(jnp.float32)
                mu = jnp.mean(x32, axis=-1, keepdims=True)
                var = jnp.mean(jnp.square(x32 - mu), axis=-1, keepdims=True)
                x32 = (x32 - mu) * jax.lax.rsqrt(var + 1e-5)
                x32 = x32 * g_ref[...].astype(jnp.float32) + beta_ref[...].astype(jnp.float32)
                s_ref[...] = x32.astype(s_ref.dtype)

            x = s_ref[...]
        else:
            x = x_ref[...]

        # matmul in the input dtype (bf16 on bf16 models), f32 accumulation only
        part = jnp.dot(x, w_ref[...], preferred_element_type=jnp.float32)

        def epilogue(acc):
            y = acc
            if has_bias:
                y = y + b_ref[...].astype(jnp.float32)
            if act == "gelu":
                y = jax.nn.gelu(y, approximate=False)  # exact GELU == torch.nn.GELU()
            if has_res:
                y = y + res_ref[...].astype(jnp.float32)
            o_ref[...] = y.astype(o_ref.dtype)

        if nk == 1:
            epilogue(part)
        else:
            @pl.when(pl.program_id(2) == 0)
            def _init():
                s_ref[...] = jnp.zeros_like(s_ref)

            s_ref[...] += part

            @pl.when(pl.program_id(2) == nk - 1)
            def _fin():
                epilogue(s_ref[...])

    return kernel


def pallas_linear(x, w, b=None, *, ln_gamma=None, ln_beta=None, act=None,
                  residual=None, out_dtype=None, bm=256, bn=1024, bk=1024):
    """x: (M, K), w: (K, N), b: (N,) or None, residual: (M, N) or None.

    If ln_gamma/ln_beta are given, LayerNorm(x) is applied as an in-kernel prologue
    (K must then be a single block, which holds for K = n_state)."""
    M0, K = x.shape
    Kw, N = w.shape
    assert K == Kw
    out_dtype = out_dtype or x.dtype
    has_ln = ln_gamma is not None
    has_bias = b is not None
    has_res = residual is not None

    # pad rows so M can always be tiled; bf16 packs 16 rows per sublane group
    r_align = 16 if x.dtype == jnp.bfloat16 else 8
    M = _round_up(M0, r_align)
    if M != M0:
        x = jnp.pad(x, ((0, M - M0), (0, 0)))
        if has_res:
            residual = jnp.pad(residual, ((0, M - M0), (0, 0)))

    tm = _choose_tile(M, bm, r_align)
    tn = _choose_tile(N, bn, 128)
    tk = K if has_ln else _choose_tile(K, bk, 128)
    nk = K // tk
    nj = N // tn
    assert not (has_ln and nk > 1)

    if nk > 1:
        grid = (M // tm, nj, nk)
        x_spec = pl.BlockSpec((tm, tk), lambda i, j, k: (i, k))
        w_spec = pl.BlockSpec((tk, tn), lambda i, j, k: (k, j))
        b_spec = pl.BlockSpec((1, tn), lambda i, j, k: (0, j))
        r_spec = pl.BlockSpec((tm, tn), lambda i, j, k: (i, j))
        o_spec = pl.BlockSpec((tm, tn), lambda i, j, k: (i, j))
        ln_spec = pl.BlockSpec((1, K), lambda i, j, k: (0, 0))
        sem = ("parallel", "parallel", "arbitrary")
        scratch = [pltpu.VMEM((tm, tn), jnp.float32)]
    else:
        grid = (M // tm, nj)
        x_spec = pl.BlockSpec((tm, tk), lambda i, j: (i, 0))
        w_spec = pl.BlockSpec((tk, tn), lambda i, j: (0, j))
        b_spec = pl.BlockSpec((1, tn), lambda i, j: (0, j))
        r_spec = pl.BlockSpec((tm, tn), lambda i, j: (i, j))
        o_spec = pl.BlockSpec((tm, tn), lambda i, j: (i, j))
        ln_spec = pl.BlockSpec((1, K), lambda i, j: (0, 0))
        # with the LN-hoist scratch, j must not be split across cores
        sem = ("parallel", "arbitrary") if has_ln else ("parallel", "parallel")
        scratch = [pltpu.VMEM((tm, K), x.dtype)] if has_ln else []

    in_specs = [x_spec]
    args = [x]
    if has_ln:
        in_specs += [ln_spec, ln_spec]
        args += [ln_gamma.reshape(1, K), ln_beta.reshape(1, K)]
    in_specs.append(w_spec)
    args.append(w)
    if has_bias:
        in_specs.append(b_spec)
        args.append(b.reshape(1, N))
    if has_res:
        in_specs.append(r_spec)
        args.append(residual)

    kernel = _make_linear_kernel(nk=nk, has_ln=has_ln, has_bias=has_bias,
                                 has_res=has_res, act=act)
    out = pl.pallas_call(
        kernel,
        out_shape=jax.ShapeDtypeStruct((M, N), out_dtype),
        grid=grid,
        in_specs=in_specs,
        out_specs=o_spec,
        scratch_shapes=scratch,
        compiler_params=pltpu.CompilerParams(
            dimension_semantics=sem, vmem_limit_bytes=_vmem_limit()),
    )(*args)
    return out[:M0] if M != M0 else out


# ----------------------------------------------------------------------------
# Flash-style attention kernel: all heads of one (batch, query-tile) per grid step,
# KV tiled over the innermost grid axis with an online softmax.
#   * head-batched einsums, matmuls in the input dtype, f32 accumulation only
#   * causal KV tiles strictly above the diagonal are skipped (pl.when)
#   * lane-dense (tq, D) output store
# ----------------------------------------------------------------------------
def _make_flash_attention_kernel(*, n_head, scale, has_mask, tq, tk, nkv):
    def kernel(*refs):
        if has_mask:
            q_ref, k_ref, v_ref, mask_ref, o_ref, m_sc, l_sc, acc_sc = refs
        else:
            q_ref, k_ref, v_ref, o_ref, m_sc, l_sc, acc_sc = refs
        kv = pl.program_id(2)

        @pl.when(kv == 0)
        def _init():
            m_sc[...] = jnp.full_like(m_sc, -jnp.inf)
            l_sc[...] = jnp.zeros_like(l_sc)
            acc_sc[...] = jnp.zeros_like(acc_sc)

        def _compute():
            D = q_ref.shape[-1]
            d = D // n_head
            # full 1/sqrt(d) folded into q only (mathematically == torch's d**-0.25 on q and k)
            qh = (q_ref[0] * scale).reshape(tq, n_head, d)
            kh = k_ref[0].reshape(tk, n_head, d)
            vh = v_ref[0].reshape(tk, n_head, d)
            # head-batched QK^T in the input dtype, f32 accumulation
            s = jnp.einsum("qhd,khd->hqk", qh, kh,
                           preferred_element_type=jnp.float32)          # (H, tq, tk)
            if has_mask:
                s = s + mask_ref[...][None, :, :]
            m_prev = m_sc[...]
            m_new = jnp.maximum(m_prev, jnp.max(s, axis=-1, keepdims=True))
            alpha = jnp.exp(m_prev - m_new)
            p = jnp.exp(s - m_new)
            l_sc[...] = alpha * l_sc[...] + jnp.sum(p, axis=-1, keepdims=True)
            pv = jnp.einsum("hqk,khd->hqd", p.astype(vh.dtype), vh,
                            preferred_element_type=jnp.float32)          # (H, tq, d)
            acc_sc[...] = alpha * acc_sc[...] + pv
            m_sc[...] = m_new

        if has_mask:
            # causal: a KV tile strictly above the diagonal contributes nothing -> skip compute
            pl.when(kv * tk <= pl.program_id(1) * tq + (tq - 1))(_compute)
        else:
            _compute()

        @pl.when(kv == nkv - 1)
        def _fin():
            # NOTE: l > 0 always holds here (causal rows always see key 0; cross-attn unmasked).
            inv = pl.reciprocal(l_sc[...], approx=True)                  # EUP slot, ~free
            o = acc_sc[...] * inv                                        # (H, tq, d)
            o_ref[0] = jnp.transpose(o, (1, 0, 2)).reshape(tq, -1).astype(o_ref.dtype)

    return kernel


def pallas_attention(q, k, v, mask, n_head, *, bq=128, bkv=256):
    """q: (B, Tq, D), k/v: (B, Tk, D), mask: (Tq, Tk) float32 additive or None -> (B, Tq, D)."""
    B, Tq, D = q.shape
    Tk = k.shape[1]
    d = D // n_head
    scale = float(d) ** (-0.5)
    tq = _choose_tile(Tq, bq, 8)
    tk = _choose_tile(Tk, bkv, 8)
    nkv = Tk // tk
    has_mask = mask is not None

    in_specs = [
        pl.BlockSpec((1, tq, D), lambda b, i, j: (b, i, 0)),
        pl.BlockSpec((1, tk, D), lambda b, i, j: (b, j, 0)),
        pl.BlockSpec((1, tk, D), lambda b, i, j: (b, j, 0)),
    ]
    args = [q, k, v]
    if has_mask:
        in_specs.append(pl.BlockSpec((tq, tk), lambda b, i, j: (i, j)))
        args.append(mask.astype(jnp.float32))

    kernel = _make_flash_attention_kernel(n_head=n_head, scale=scale, has_mask=has_mask,
                                          tq=tq, tk=tk, nkv=nkv)
    return pl.pallas_call(
        kernel,
        out_shape=jax.ShapeDtypeStruct((B, Tq, D), q.dtype),
        grid=(B, Tq // tq, nkv),
        in_specs=in_specs,
        out_specs=pl.BlockSpec((1, tq, D), lambda b, i, j: (b, i, 0)),
        scratch_shapes=[pltpu.VMEM((n_head, tq, 1), jnp.float32),   # running max
                        pltpu.VMEM((n_head, tq, 1), jnp.float32),   # running sum
                        pltpu.VMEM((n_head, tq, d), jnp.float32)],  # output accumulator
        compiler_params=pltpu.CompilerParams(
            dimension_semantics=("parallel", "parallel", "arbitrary"),
            vmem_limit_bytes=_vmem_limit()),
    )(*args)


# ----------------------------------------------------------------------------
# Model composition (thin JAX glue around the Pallas kernels)
# ----------------------------------------------------------------------------
def residual_block(p, x2d, xa2d, B, T, Ta, mask, n_head):
    D = x2d.shape[1]

    # --- self-attention: fused attn-LN + QKV projection ---
    qkv = pallas_linear(x2d, p["attn_wqkv"], p["attn_bqkv"],
                        ln_gamma=p["attn_ln_g"], ln_beta=p["attn_ln_b"])
    q = qkv[:, :D].reshape(B, T, D)
    k = qkv[:, D:2 * D].reshape(B, T, D)
    v = qkv[:, 2 * D:].reshape(B, T, D)
    wv = pallas_attention(q, k, v, mask[:T, :T], n_head).reshape(B * T, D)
    x2d = pallas_linear(wv, p["attn_wo"], p["attn_bo"], residual=x2d)  # fused residual add

    # --- cross-attention: LN fused into Q projection; K/V fused, taken from xa (no mask) ---
    q = pallas_linear(x2d, p["xattn_wq"], p["xattn_bq"],
                      ln_gamma=p["xattn_ln_g"], ln_beta=p["xattn_ln_b"]).reshape(B, T, D)
    kv = pallas_linear(xa2d, p["xattn_wkv"], p["xattn_bkv"])
    kx = kv[:, :D].reshape(B, Ta, D)
    vx = kv[:, D:].reshape(B, Ta, D)
    wv = pallas_attention(q, kx, vx, None, n_head).reshape(B * T, D)
    x2d = pallas_linear(wv, p["xattn_wo"], p["xattn_bo"], residual=x2d)

    # --- MLP: fused mlp-LN + W1 + GELU, then W2 with fused residual (K tiled when large) ---
    h = pallas_linear(x2d, p["w1"], p["b1"], act="gelu",
                      ln_gamma=p["mlp_ln_g"], ln_beta=p["mlp_ln_b"])
    x2d = pallas_linear(h, p["w2"], p["b2"], residual=x2d)
    return x2d


def text_decoder_forward(prep, tokens, xa, n_head):
    B, T = tokens.shape
    V, D = prep["tok_emb"].shape
    Ta = xa.shape[1]
    # offset = 0 (no kv_cache).  TODO(synk): kv_cache inference path not implemented.
    x = jnp.take(prep["tok_emb"], tokens, axis=0) + prep["pos_emb"][:T]
    x = x.astype(xa.dtype)
    x2d = x.reshape(B * T, D)
    xa2d = xa.astype(x.dtype).reshape(B * Ta, D)
    for blk in prep["blocks"]:
        x2d = residual_block(blk, x2d, xa2d, B, T, Ta, prep["mask"], n_head)
    # final LN fused into the tied-embedding logits matmul; vocab pre-padded to 512-multiple
    logits = pallas_linear(x2d, prep["tok_emb_T"],
                           ln_gamma=prep["ln_g"], ln_beta=prep["ln_b"],
                           out_dtype=jnp.float32)[:, :V]
    return logits.reshape(B, T, V)


def prepare_params(params, dtype=jnp.float32):
    """One-time parameter prep: cast to compute dtype (bf16-ready), fuse QKV / KV weights,
    pre-transpose + pad tied embedding.  Mask stays float32."""
    V, D = params["tok_emb"].shape
    c = lambda a: a.astype(dtype)
    zeros = jnp.zeros((D,), dtype=dtype)
    blocks = []
    for p in params["blocks"]:
        a, x = p["attn"], p["xattn"]
        blocks.append(dict(
            attn_ln_g=c(p["attn_ln_g"]), attn_ln_b=c(p["attn_ln_b"]),
            attn_wqkv=jnp.concatenate([c(a["wq"]), c(a["wk"]), c(a["wv"])], axis=1),
            attn_bqkv=jnp.concatenate([c(a["bq"]), zeros, c(a["bv"])]),   # K proj has no bias
            attn_wo=c(a["wo"]), attn_bo=c(a["bo"]),
            xattn_ln_g=c(p["xattn_ln_g"]), xattn_ln_b=c(p["xattn_ln_b"]),
            xattn_wq=c(x["wq"]), xattn_bq=c(x["bq"]),
            xattn_wkv=jnp.concatenate([c(x["wk"]), c(x["wv"])], axis=1),
            xattn_bkv=jnp.concatenate([zeros, c(x["bv"])]),
            xattn_wo=c(x["wo"]), xattn_bo=c(x["bo"]),
            mlp_ln_g=c(p["mlp_ln_g"]), mlp_ln_b=c(p["mlp_ln_b"]),
            w1=c(p["w1"]), b1=c(p["b1"]), w2=c(p["w2"]), b2=c(p["b2"]),
        ))
    tok_emb_T = c(params["tok_emb"]).T                    # pre-transposed tied embedding
    Vp = _round_up(V, _VOCAB_PAD)
    if Vp != V:                                           # pad vocab so N tiles stay wide
        tok_emb_T = jnp.pad(tok_emb_T, ((0, 0), (0, Vp - V)))
    return dict(
        tok_emb=c(params["tok_emb"]), tok_emb_T=tok_emb_T,
        pos_emb=c(params["pos_emb"]), blocks=blocks,
        ln_g=c(params["ln_g"]), ln_b=c(params["ln_b"]), mask=params["mask"],
    )


# ----------------------------------------------------------------------------
# Pure-JAX reference (mirrors torch semantics) for validation
# ----------------------------------------------------------------------------
def _ref_ln(x, g, b):
    x32 = x.astype(jnp.float32)
    mu = x32.mean(-1, keepdims=True)
    var = ((x32 - mu) ** 2).mean(-1, keepdims=True)
    return ((x32 - mu) * jax.lax.rsqrt(var + 1e-5) * g + b).astype(x.dtype)


def _ref_mha(p, x, kv_in, mask, n_head):
    B, T, D = x.shape
    Tk = kv_in.shape[1]
    d = D // n_head
    scale = float(d) ** (-0.25)
    q = x @ p["wq"] + p["bq"]
    k = kv_in @ p["wk"]
    v = kv_in @ p["wv"] + p["bv"]
    qh = q.reshape(B, T, n_head, d).transpose(0, 2, 1, 3) * scale
    kh = k.reshape(B, Tk, n_head, d).transpose(0, 2, 3, 1) * scale
    vh = v.reshape(B, Tk, n_head, d).transpose(0, 2, 1, 3)
    qk = (qh @ kh).astype(jnp.float32)
    if mask is not None:
        qk = qk + mask[:T, :T]
    w = jax.nn.softmax(qk, axis=-1).astype(q.dtype)
    wv = (w @ vh).transpose(0, 2, 1, 3).reshape(B, T, D)
    return wv @ p["wo"] + p["bo"]


def ref_forward(params, tokens, xa, n_head):
    x = jnp.take(params["tok_emb"], tokens, axis=0) + params["pos_emb"][: tokens.shape[1]]
    x = x.astype(xa.dtype)
    for p in params["blocks"]:
        h = _ref_ln(x, p["attn_ln_g"], p["attn_ln_b"])
        x = x + _ref_mha(p["attn"], h, h, params["mask"], n_head)
        h = _ref_ln(x, p["xattn_ln_g"], p["xattn_ln_b"])
        x = x + _ref_mha(p["xattn"], h, xa, None, n_head)
        h = _ref_ln(x, p["mlp_ln_g"], p["mlp_ln_b"])
        h = jax.nn.gelu(h @ p["w1"] + p["b1"], approximate=False) @ p["w2"] + p["b2"]
        x = x + h
    x = _ref_ln(x, params["ln_g"], params["ln_b"])
    return (x @ params["tok_emb"].T.astype(x.dtype)).astype(jnp.float32)


def _ref_attn(q, k, v, mask, n_head):
    """Plain softmax attention reference for the standalone attention-kernel tests."""
    B, T, D = q.shape
    Tk = k.shape[1]
    d = D // n_head
    qh = q.reshape(B, T, n_head, d).transpose(0, 2, 1, 3)
    kh = k.reshape(B, Tk, n_head, d).transpose(0, 2, 1, 3)
    vh = v.reshape(B, Tk, n_head, d).transpose(0, 2, 1, 3)
    s = jnp.einsum("bhqd,bhkd->bhqk", qh, kh).astype(jnp.float32) * (float(d) ** -0.5)
    if mask is not None:
        s = s + mask
    w = jax.nn.softmax(s, axis=-1)
    o = jnp.einsum("bhqk,bhkd->bhqd", w, vh.astype(jnp.float32))
    return o.transpose(0, 2, 1, 3).reshape(B, T, D).astype(q.dtype)


# ----------------------------------------------------------------------------
# Deterministic parameter init (raw, torch-equivalent layout)
# ----------------------------------------------------------------------------
def init_params(key, n_vocab, n_ctx, n_state, n_layer):
    def nrm(k, shape, s=0.02):
        return jax.random.normal(k, shape, dtype=jnp.float32) * s

    keys = iter(jax.random.split(key, 8 + n_layer * 32))
    D, M = n_state, 4 * n_state

    def mha_params():
        return dict(
            wq=nrm(next(keys), (D, D)), bq=nrm(next(keys), (D,)),
            wk=nrm(next(keys), (D, D)),
            wv=nrm(next(keys), (D, D)), bv=nrm(next(keys), (D,)),
            wo=nrm(next(keys), (D, D)), bo=nrm(next(keys), (D,)),
        )

    blocks = []
    for _ in range(n_layer):
        blocks.append(dict(
            attn_ln_g=1.0 + nrm(next(keys), (D,)), attn_ln_b=nrm(next(keys), (D,)),
            attn=mha_params(),
            xattn_ln_g=1.0 + nrm(next(keys), (D,)), xattn_ln_b=nrm(next(keys), (D,)),
            xattn=mha_params(),
            mlp_ln_g=1.0 + nrm(next(keys), (D,)), mlp_ln_b=nrm(next(keys), (D,)),
            w1=nrm(next(keys), (D, M)), b1=nrm(next(keys), (M,)),
            w2=nrm(next(keys), (M, D)), b2=nrm(next(keys), (D,)),
        ))

    mask = jnp.triu(jnp.full((n_ctx, n_ctx), -jnp.inf, dtype=jnp.float32), k=1)
    return dict(
        tok_emb=nrm(next(keys), (n_vocab, D)),
        pos_emb=nrm(next(keys), (n_ctx, D)),
        blocks=blocks,
        ln_g=1.0 + nrm(next(keys), (D,)), ln_b=nrm(next(keys), (D,)),
        mask=mask,
    )


# ----------------------------------------------------------------------------
if __name__ == "__main__":
    jax.config.update("jax_default_matmul_precision", "highest")  # accurate f32 references

    # small config
    n_vocab, n_ctx, n_state, n_head, n_layer = 64, 8, 32, 4, 2
    B, T, Ta = 2, 8, 16

    key = jax.random.PRNGKey(0)
    kp, kt, ka = jax.random.split(key, 3)
    raw_params = init_params(kp, n_vocab, n_ctx, n_state, n_layer)
    tokens = jax.random.randint(kt, (B, T), 0, n_vocab, dtype=jnp.int32)
    xa = jax.random.normal(ka, (B, Ta, n_state), dtype=jnp.float32)

    ref = jax.block_until_ready(ref_forward(raw_params, tokens, xa, n_head))

    # f32 end-to-end
    prep32 = prepare_params(raw_params, dtype=jnp.float32)
    logits32 = jax.block_until_ready(text_decoder_forward(prep32, tokens, xa, n_head))
    assert logits32.shape == (B, T, n_vocab) and logits32.dtype == jnp.float32
    np.testing.assert_allclose(np.asarray(logits32), np.asarray(ref), atol=3e-3, rtol=3e-3)

    # bf16 end-to-end (MXU-native operands, f32 accumulation); loose tolerance vs f32 ref
    prep16 = prepare_params(raw_params, dtype=jnp.bfloat16)
    logits16 = jax.block_until_ready(
        text_decoder_forward(prep16, tokens, xa.astype(jnp.bfloat16), n_head))
    assert logits16.dtype == jnp.float32
    np.testing.assert_allclose(np.asarray(logits16), np.asarray(ref), atol=5e-2, rtol=5e-2)

    # standalone checks: flash attention with multi-tile KV (online softmax + causal skip)
    kq, kk, kv_ = jax.random.split(jax.random.PRNGKey(1), 3)
    Dh, Hh, Tq2, Tk2 = 32, 4, 32, 48
    qa = jax.random.normal(kq, (2, Tq2, Dh), jnp.float32)
    ka_ = jax.random.normal(kk, (2, Tk2, Dh), jnp.float32)
    va = jax.random.normal(kv_, (2, Tk2, Dh), jnp.float32)
    causal = jnp.triu(jnp.full((Tq2, Tq2), -jnp.inf, jnp.float32), k=1)
    out_c = jax.block_until_ready(
        pallas_attention(qa, qa, va[:, :Tq2], causal, Hh, bq=8, bkv=8))
    np.testing.assert_allclose(np.asarray(out_c),
                               np.asarray(_ref_attn(qa, qa, va[:, :Tq2], causal, Hh)),
                               atol=5e-3, rtol=5e-3)
    out_x = jax.block_until_ready(pallas_attention(qa, ka_, va, None, Hh, bq=16, bkv=16))
    np.testing.assert_allclose(np.asarray(out_x),
                               np.asarray(_ref_attn(qa, ka_, va, None, Hh)),
                               atol=5e-3, rtol=5e-3)

    # K-tiled accumulator path of the linear kernel
    kx, kw = jax.random.split(jax.random.PRNGKey(2))
    xt = jax.random.normal(kx, (16, 256), jnp.float32)
    wt = jax.random.normal(kw, (256, 128), jnp.float32) * 0.1
    yt = jax.block_until_ready(pallas_linear(xt, wt, bm=8, bn=128, bk=128))
    np.testing.assert_allclose(np.asarray(yt), np.asarray(xt) @ np.asarray(wt),
                               atol=1e-2, rtol=5e-3)

    # LN hoisted across column tiles (nj > 1) path of the linear kernel
    kg, kb = jax.random.split(jax.random.PRNGKey(3))
    g = 1.0 + 0.1 * jax.random.normal(kg, (256,), jnp.float32)
    bt = 0.1 * jax.random.normal(kb, (256,), jnp.float32)
    wt2 = jax.random.normal(kw, (256, 256), jnp.float32) * 0.05
    yt2 = jax.block_until_ready(pallas_linear(xt, wt2, ln_gamma=g, ln_beta=bt, bn=128))
    ref2 = _ref_ln(xt, g, bt) @ wt2
    np.testing.assert_allclose(np.asarray(yt2), np.asarray(ref2), atol=2e-3, rtol=2e-3)

    print("KERNEL_OK")
</pallas_src>

<mosaic_0001>
module attributes {stable_mosaic.version = 11 : i64} {
  func.func @kernel(%arg0: i32, %arg1: i32, %arg2: memref<16x32xf32, #tpu.memory_space<vmem>>, %arg3: memref<1x32xf32, #tpu.memory_space<vmem>>, %arg4: memref<1x32xf32, #tpu.memory_space<vmem>>, %arg5: memref<32x96xf32, #tpu.memory_space<vmem>>, %arg6: memref<1x96xf32, #tpu.memory_space<vmem>>, %arg7: memref<16x96xf32, #tpu.memory_space<vmem>>, %arg8: memref<16x32xf32, #tpu.memory_space<vmem>>) attributes {dimension_semantics = [#tpu.dimension_semantics<parallel>, #tpu.dimension_semantics<arbitrary>], iteration_bounds = array<i64: 1, 1>, scalar_prefetch = 0 : i64, scratch_operands = 1 : i64, tpu.core_type = #tpu.core_type<tc>, window_params = [{transform_indices = @transform_0, window_bounds = array<i64: 16, 32>}, {pipeline_mode = #tpu.pipeline_mode<synchronous>, transform_indices = @transform_1, window_bounds = array<i64: 1, 32>}, {pipeline_mode = #tpu.pipeline_mode<synchronous>, transform_indices = @transform_2, window_bounds = array<i64: 1, 32>}, {transform_indices = @transform_3, window_bounds = array<i64: 32, 96>}, {transform_indices = @transform_4, window_bounds = array<i64: 1, 96>}, {transform_indices = @transform_5, window_bounds = array<i64: 16, 96>}]} {
    %c0_i32 = arith.constant 0 : i32
    %0 = arith.cmpi eq, %arg1, %c0_i32 : i32
    %1 = arith.extui %0 : i1 to i32
    %c0_i32_0 = arith.constant 0 : i32
    %2 = arith.cmpi ne, %1, %c0_i32_0 : i32
    scf.if %2 {
      %c0_8 = arith.constant 0 : index
      %c0_9 = arith.constant 0 : index
      %10 = vector.load %arg2[%c0_8, %c0_9] : memref<16x32xf32, #tpu.memory_space<vmem>>, vector<16x32xf32>
      %cst_10 = arith.constant dense<0.000000e+00> : vector<16xf32>
      %11 = vector.multi_reduction <add>, %10, %cst_10 [1] : vector<16x32xf32> to vector<16xf32>
      %12 = vector.shape_cast %11 : vector<16xf32> to vector<16x1xf32>
      %cst_11 = arith.constant 3.200000e+01 : f32
      %13 = vector.broadcast %cst_11 : f32 to vector<16x1xf32>
      %14 = arith.divf %12, %13 : vector<16x1xf32>
      %15 = vector.broadcast %14 : vector<16x1xf32> to vector<16x32xf32>
      %16 = arith.subf %10, %15 : vector<16x32xf32>
      %17 = arith.mulf %16, %16 : vector<16x32xf32>
      %cst_12 = arith.constant dense<0.000000e+00> : vector<16xf32>
      %18 = vector.multi_reduction <add>, %17, %cst_12 [1] : vector<16x32xf32> to vector<16xf32>
      %19 = vector.shape_cast %18 : vector<16xf32> to vector<16x1xf32>
      %cst_13 = arith.constant 3.200000e+01 : f32
      %20 = vector.broadcast %cst_13 : f32 to vector<16x1xf32>
      %21 = arith.divf %19, %20 : vector<16x1xf32>
      %22 = vector.broadcast %14 : vector<16x1xf32> to vector<16x32xf32>
      %23 = arith.subf %10, %22 : vector<16x32xf32>
      %cst_14 = arith.constant 9.99999974E-6 : f32
      %24 = vector.broadcast %cst_14 : f32 to vector<16x1xf32>
      %25 = arith.addf %21, %24 : vector<16x1xf32>
      %26 = math.rsqrt %25 : vector<16x1xf32>
      %27 = vector.broadcast %26 : vector<16x1xf32> to vector<16x32xf32>
      %28 = arith.mulf %23, %27 : vector<16x32xf32>
      %c0_15 = arith.constant 0 : index
      %c0_16 = arith.constant 0 : index
      %29 = vector.load %arg3[%c0_15, %c0_16] : memref<1x32xf32, #tpu.memory_space<vmem>>, vector<1x32xf32>
      %30 = vector.broadcast %29 : vector<1x32xf32> to vector<16x32xf32>
      %31 = arith.mulf %28, %30 : vector<16x32xf32>
      %c0_17 = arith.constant 0 : index
      %c0_18 = arith.constant 0 : index
      %32 = vector.load %arg4[%c0_17, %c0_18] : memref<1x32xf32, #tpu.memory_space<vmem>>, vector<1x32xf32>
      %33 = vector.broadcast %32 : vector<1x32xf32> to vector<16x32xf32>
      %34 = arith.addf %31, %33 : vector<16x32xf32>
      %c0_19 = arith.constant 0 : index
      %c0_20 = arith.constant 0 : index
      %35 = vector.load %arg8[%c0_19, %c0_20] : memref<16x32xf32, #tpu.memory_space<vmem>>, vector<16x32xf32>
      tpu.vector_store %arg8[%c0_19, %c0_20], %34 {strides = array<i32>} : memref<16x32xf32, #tpu.memory_space<vmem>>, vector<16x32xf32>,
    } else {
    }
    %c0 = arith.constant 0 : index
    %c0_1 = arith.constant 0 : index
    %3 = vector.load %arg8[%c0, %c0_1] : memref<16x32xf32, #tpu.memory_space<vmem>>, vector<16x32xf32>
    %c0_2 = arith.constant 0 : index
    %c0_3 = arith.constant 0 : index
    %4 = vector.load %arg5[%c0_2, %c0_3] : memref<32x96xf32, #tpu.memory_space<vmem>>, vector<32x96xf32>
    %cst = arith.constant dense<0.000000e+00> : vector<16x96xf32>
    %5 = tpu.matmul %3, %4, %cst {dimension_numbers = #tpu.dot_dimension_numbers<[1], [0], [0], [1], [0, 0, 1, 1], [], []>, precision = #tpu.contract_precision<fp32>} : vector<16x32xf32>, vector<32x96xf32>, vector<16x96xf32> -> vector<16x96xf32>
    %c0_4 = arith.constant 0 : index
    %c0_5 = arith.constant 0 : index
    %6 = vector.load %arg6[%c0_4, %c0_5] : memref<1x96xf32, #tpu.memory_space<vmem>>, vector<1x96xf32>
    %7 = vector.broadcast %6 : vector<1x96xf32> to vector<16x96xf32>
    %8 = arith.addf %5, %7 : vector<16x96xf32>
    %c0_6 = arith.constant 0 : index
    %c0_7 = arith.constant 0 : index
    %9 = vector.load %arg7[%c0_6, %c0_7] : memref<16x96xf32, #tpu.memory_space<vmem>>, vector<16x96xf32>
    tpu.vector_store %arg7[%c0_6, %c0_7], %8 {strides = array<i32>} : memref<16x96xf32, #tpu.memory_space<vmem>>, vector<16x96xf32>,
    return
  }
  func.func @transform_0(%arg0: i32, %arg1: i32) -> (i32, i32) {
    %c0_i32 = arith.constant 0 : i32
    %c0_i32_0 = arith.constant 0 : i32
    return %arg0, %c0_i32 : i32, i32
  }
  func.func @transform_1(%arg0: i32, %arg1: i32) -> (i32, i32) {
    %c0_i32 = arith.constant 0 : i32
    %c0_i32_0 = arith.constant 0 : i32
    %c0_i32_1 = arith.constant 0 : i32
    return %c0_i32, %c0_i32_0 : i32, i32
  }
  func.func @transform_2(%arg0: i32, %arg1: i32) -> (i32, i32) {
    %c0_i32 = arith.constant 0 : i32
    %c0_i32_0 = arith.constant 0 : i32
    %c0_i32_1 = arith.constant 0 : i32
    return %c0_i32, %c0_i32_0 : i32, i32
  }
  func.func @transform_3(%arg0: i32, %arg1: i32) -> (i32, i32) {
    %c0_i32 = arith.constant 0 : i32
    %c0_i32_0 = arith.constant 0 : i32
    return %c0_i32, %arg1 : i32, i32
  }
  func.func @transform_4(%arg0: i32, %arg1: i32) -> (i32, i32) {
    %c0_i32 = arith.constant 0 : i32
    %c0_i32_0 = arith.constant 0 : i32
    return %c0_i32, %arg1 : i32, i32
  }
  func.func @transform_5(%arg0: i32, %arg1: i32) -> (i32, i32) {
    %c0_i32 = arith.constant 0 : i32
    return %arg0, %arg1 : i32, i32
  }
}

</mosaic_0001>

<llo_original>
// kernel: tpu_custom_call.1
$region0: #{tpu_custom_call.1}
  #allocation0 [shape = 'u32[]', space=smem, size = 0x4, offset = 0x4, fixed_abs, tag = 'smem constant byte address 0x4 - core index']
  #allocation1 [shape = 'u32[144,128]{1,0:T(1,128)}', space=vmem, size = 0x12000, scoped, tag = 'internal scratch']
  #allocation2 [shape = 'f32[16,32]{1,0:T(8,128)}', space=vmem, size = 0x2000, scoped, tag = 'scratch operand']
  %s0 = inlined_call_operand.hbm [shape: f32[16,32], index: 0, kind: input, shape index: {}]
  %s1 = inlined_call_operand.vmem [shape: f32[1,32], index: 1, kind: input, shape index: {}]
  %s2 = inlined_call_operand.vmem [shape: f32[1,32], index: 2, kind: input, shape index: {}]
  %s3 = inlined_call_operand.hbm [shape: f32[32,96], index: 3, kind: input, shape index: {}]
  %s4 = inlined_call_operand.vmem [shape: f32[1,96], index: 4, kind: input, shape index: {}]
  %s5 = inlined_call_operand.hbm [shape: f32[16,96], index: 5, kind: output, shape index: {}]
  %s6 = sld [smem:[#allocation0]]
  $region42: #{tpu_custom_call.1} parent=0
    _
  %s8 = ssub.s32 1, %s6
  %s9 = scalar_select 0, %s8, %s6
  $region1: #{tpu_custom_call.1} parent=0
    #allocation3 [shape = 'u8[8192]{0}', space=vmem, size = 0x2000, scoped, tag = 'input window, operand 0, single buffered']
    #allocation4 [shape = 's32[1]{0}', space=sflag, size = 0x4, scoped, tag = 'scoped memory for tpu_custom_call.1']
    #allocation5 [shape = 's32[1]{0}', space=sflag, size = 0x4, scoped, tag = 'scoped memory for tpu_custom_call.1']
    #allocation6 [shape = 'u8[16384]{0}', space=vmem, size = 0x4000, scoped, tag = 'input window, operand 3, single buffered']
    #allocation7 [shape = 's32[1]{0}', space=sflag, size = 0x4, scoped, tag = 'scoped memory for tpu_custom_call.1']
    #allocation8 [shape = 'u8[8192]{0}', space=vmem, size = 0x2000, scoped, tag = 'output window, operand 0, single buffered']
    %10 = vsyncpa [#allocation4], 0
    %11 = vsyncpa [#allocation7], 0
    %12 = vsyncpa [#allocation5], 0
    // Predicated region
    $region2: #{tpu_custom_call.1} parent=1 // pred_check
      _
    $region3: #{tpu_custom_call.1} parent=1 // pred_check_branch
      %14 = sbr.rel (0) target = $region5
    $region4: #{tpu_custom_call.1} parent=1 // pred_region
      %s16 = ssub.s32 256, 256
      %17 = vsyncadd [#allocation4], %s16
      %s18 = sshll.u32 [#allocation3], 4
      %s19 = int_to_ptr.vmem [resolvable:$true] %s18
      %24 = dma.hbm_to_vmem [thread:$0]  %s0, 256, %s19, [#allocation4], 128, 128, 8
    $region5: #{tpu_custom_call.1} parent=1 // pred_fallthru
      _
    // Predicated region
    $region6: #{tpu_custom_call.1} parent=1 // pred_check
      _
    $region7: #{tpu_custom_call.1} parent=1 // pred_check_branch
      %26 = sbr.rel (0) target = $region9
    $region8: #{tpu_custom_call.1} parent=1 // pred_region
      _
    $region9: #{tpu_custom_call.1} parent=1 // pred_fallthru
      _
    // Predicated region
    $region10: #{tpu_custom_call.1} parent=1 // pred_check
      _
    $region11: #{tpu_custom_call.1} parent=1 // pred_check_branch
      %28 = sbr.rel (0) target = $region13
    $region12: #{tpu_custom_call.1} parent=1 // pred_region
      _
    $region13: #{tpu_custom_call.1} parent=1 // pred_fallthru
      _
    // Predicated region
    $region14: #{tpu_custom_call.1} parent=1 // pred_check
      _
    $region15: #{tpu_custom_call.1} parent=1 // pred_check_branch
      %30 = sbr.rel (0) target = $region17
    $region16: #{tpu_custom_call.1} parent=1 // pred_region
      %s32 = ssub.s32 512, 512
      %33 = vsyncadd [#allocation7], %s32
      %s34 = sshll.u32 [#allocation6], 4
      %s35 = int_to_ptr.vmem [resolvable:$true] %s34
      %40 = dma.hbm_to_vmem [thread:$0]  %s3, 512, %s35, [#allocation7], 128, 128, 8
    $region17: #{tpu_custom_call.1} parent=1 // pred_fallthru
      _
    // Predicated region
    $region18: #{tpu_custom_call.1} parent=1 // pred_check
      _
    $region19: #{tpu_custom_call.1} parent=1 // pred_check_branch
      %42 = sbr.rel (0) target = $region21
    $region20: #{tpu_custom_call.1} parent=1 // pred_region
      _
    $region21: #{tpu_custom_call.1} parent=1 // pred_fallthru
      _
    // Predicated region
    $region22: #{tpu_custom_call.1} parent=1 // pred_check
      _
    $region23: #{tpu_custom_call.1} parent=1 // pred_check_branch
      %44 = sbr.rel (0) target = $region25
    $region24: #{tpu_custom_call.1} parent=1 // pred_region
      %45 = dma.done [#allocation4], 256
    $region25: #{tpu_custom_call.1} parent=1 // pred_fallthru
      _
    // Predicated region
    $region26: #{tpu_custom_call.1} parent=1 // pred_check
      _
    $region27: #{tpu_custom_call.1} parent=1 // pred_check_branch
      %47 = sbr.rel (0) target = $region29
    $region28: #{tpu_custom_call.1} parent=1 // pred_region
      %48 = dma.done [#allocation7], 512
    $region29: #{tpu_custom_call.1} parent=1 // pred_fallthru
      _
    %p49 = scmp.eq.s32.totalorder 0, 0
    // Predicated region
    $region30: #{tpu_custom_call.1} parent=1 // pred_check
      %p50 = pneg %p49
    $region31: #{tpu_custom_call.1} parent=1 // pred_check_branch
      %52 = sbr.rel (%p50) target = $region33
    $region32: #{tpu_custom_call.1} parent=1 // pred_region
      %v53 = vld [vmem:[#allocation3] sm:$0xff]
      %v54 = vld [vmem:[#allocation3 + $0x8] sm:$0xff]
      %vm55 = vcmask 261120
      %v56 = vsel %vm55, %v53, 0.0
      %57 = vadd.xlane.f32.xlu0 %v56
      %v58 = vpop.xlane.xlu0 %57
      %v59 = vsel %vm55, %v54, 0.0
      %60 = vadd.xlane.f32.xlu0 %v59
      %v61 = vpop.xlane.xlu0 %60
      %v62 = vrcp.pop 32.0
      %v63 = vmul.f32 %v58, %v62
      %v64 = vmul.f32 %v61, %v62
      %v65 = vsub.f32 %v53, %v63
      %v66 = vsub.f32 %v54, %v64
      %v67 = vmul.f32 %v65, %v65
      %v68 = vmul.f32 %v66, %v66
      %v69 = vsel %vm55, %v67, 0.0
      %70 = vadd.xlane.f32.xlu0 %v69
      %v71 = vpop.xlane.xlu0 %70
      %v72 = vsel %vm55, %v68, 0.0
      %73 = vadd.xlane.f32.xlu0 %v72
      %v74 = vpop.xlane.xlu0 %73
      %v75 = vmul.f32 %v71, %v62
      %v76 = vmul.f32 %v74, %v62
      %v77 = vadd.f32 %v75, 1e-05
      %v78 = vadd.f32 %v76, 1e-05
      %v79 = vrsqrt.pop %v77
      %v80 = vrsqrt.pop %v78
      %v81 = vmul.f32 %v65, %v79
      %v82 = vmul.f32 %v66, %v80
      %v83 = vld [vmem:[%s1] sm:$0x1]
      %v85 = vlaneseq
      %v86 = vshrl.u32 %v85, 7
      %v87 = vsub.s32 0, %v86
      %v88 = vrot.slane %v83, %v87
      %v90 = vmul.f32 %v81, %v88
      %v91 = vmul.f32 %v82, %v88
      %v92 = vld [vmem:[%s2] sm:$0x1]
      %v94 = vlaneseq
      %v95 = vshrl.u32 %v94, 7
      %v96 = vsub.s32 0, %v95
      %v97 = vrot.slane %v92, %v96
      %v99 = vadd.f32 %v90, %v97
      %v100 = vadd.f32 %v91, %v97
      %101 = vst.msk [vmem:[#allocation2] sm:$0xff] %vm55, %v99
      %102 = vst.msk [vmem:[#allocation2 + $0x8] sm:$0xff] %vm55, %v100
    $region33: #{tpu_custom_call.1} parent=1 // pred_fallthru
      _
    %v103 = vld [vmem:[#allocation2] sm:$0xff]
    %v104 = vld [vmem:[#allocation2 + $0x8] sm:$0xff]
    %v105 = vld [vmem:[#allocation6] sm:$0xff]
    %v106 = vld [vmem:[#allocation6 + $0x8] sm:$0xff]
    %v107 = vld [vmem:[#allocation6 + $0x10] sm:$0xff]
    %v108 = vld [vmem:[#allocation6 + $0x18] sm:$0xff]
    %v109 = vld [vmem:[%s4] sm:$0x1]
    %v111 = vlaneseq
    %v112 = vshrl.u32 %v111, 7
    %v113 = vsub.s32 0, %v112
    %v114 = vrot.slane %v109, %v113
    %vm116 = vcmask 261120
    %v118 = vsel %vm116, %v103, 0
    %v121 = vsel %vm116, %v104, 0
    %123 = vmatprep.subr.mxu0 0.0
    %v124 = vand.u32 %v105, 4294901760
    %125 = vmatpush1.msra.mxu0 %v124
    %126 = vmatprep.subr.mxu0 0.0
    %v127 = vand.u32 %v106, 4294901760
    %128 = vmatpush1.msra.mxu0 %v127
    %129 = vmatprep.subr.mxu0 0.0
    %v130 = vand.u32 %v107, 4294901760
    %131 = vmatpush1.msra.mxu0 %v130
    %132 = vmatprep.subr.mxu0 0.0
    %v133 = vand.u32 %v108, 4294901760
    %134 = vmatpush1.msra.mxu0 %v133
    %135 = vmatprep.subr.mxu0 0.0
    %136 = vmatpush1.msra.mxu0 0.0
    %137 = vmatprep.subr.mxu0 0.0
    %138 = vmatpush1.msra.mxu0 0.0
    %139 = vmatprep.subr.mxu0 0.0
    %140 = vmatpush1.msra.mxu0 0.0
    %141 = vmatprep.subr.mxu0 0.0
    %142 = vmatpush1.msra.mxu0 0.0
    %143 = vmatprep.subr.mxu0 0.0
    %144 = vmatpush1.msra.mxu0 0.0
    %145 = vmatprep.subr.mxu0 0.0
    %146 = vmatpush1.msra.mxu0 0.0
    %147 = vmatprep.subr.mxu0 0.0
    %148 = vmatpush1.msra.mxu0 0.0
    %149 = vmatprep.subr.mxu0 0.0
    %150 = vmatpush1.msra.mxu0 0.0
    %151 = vmatprep.subr.mxu0 0.0
    %152 = vmatpush1.msra.mxu0 0.0
    %153 = vmatprep.subr.mxu0 0.0
    %154 = vmatpush1.msra.mxu0 0.0
    %155 = vmatprep.subr.mxu0 0.0
    %156 = vmatpush1.msra.mxu0 0.0
    %157 = vmatprep.subr.mxu0 0.0
    %158 = vmatpush1.msra.mxu0 0.0
    %159 = vmatprep.subr.mxu0 0.0
    %160 = vmatpush1.msra.mxu0 0.0
    %161 = vmatprep.subr.mxu0 0.0
    %162 = vmatpush1.msra.mxu0 0.0
    %163 = vmatprep.subr.mxu0 0.0
    %164 = vmatpush1.msra.mxu0 0.0
    %165 = vmatprep.subr.mxu0 0.0
    %166 = vmatpush1.msra.mxu0 0.0
    %167 = vmatprep.subr.mxu0 0.0
    %168 = vmatpush1.msra.mxu0 0.0
    %169 = vmatprep.subr.mxu0 0.0
    %170 = vmatpush1.msra.mxu0 0.0
    %171 = vmatprep.subr.mxu0 0.0
    %172 = vmatpush1.msra.mxu0 0.0
    %173 = vmatprep.subr.mxu0 0.0
    %174 = vmatpush1.msra.mxu0 0.0
    %175 = vmatprep.subr.mxu0 0.0
    %176 = vmatpush1.msra.mxu0 0.0
    %177 = vmatprep.subr.mxu0 0.0
    %178 = vmatpush1.msra.mxu0 0.0
    %179 = vmatprep.subr.mxu0 0.0
    %180 = vmatpush1.msra.mxu0 0.0
    %181 = vmatprep.subr.mxu0 0.0
    %182 = vmatpush1.msra.mxu0 0.0
    %183 = vmatprep.subr.mxu0 0.0
    %184 = vmatpush1.msra.mxu0 0.0
    %185 = vmatprep.subr.mxu0 0.0
    %186 = vmatpush1.msra.mxu0 0.0
    %187 = vmatprep.subr.mxu0 0.0
    %188 = vmatpush1.msra.mxu0 0.0
    %189 = vmatprep.subr.mxu0 0.0
    %190 = vmatpush1.msra.mxu0 0.0
    %191 = vmatprep.mubr.f32.mxu0 0.0
    %v192 = vand.u32 %v118, 4294901760
    %v193 = vsub.f32 %v118, %v192
    %v194 = vand.u32 %v193, 4294901760
    %v195 = vsub.f32 %v193, %v194
    %v196 = vand.u32 %v195, 4294901760
    %197 = vmatmul.mubr.f32.gmra.mrb[0].mxu0 %v196
    %v198 = vpop.f32.mrb[0].mxu0
    %v199 = vadd.f32 %v114, %v198
    %v200 = vpop.f32.mrb[0].mxu0
    %201 = vmatprep.mubr.f32.mxu0 0.0
    %v202 = vand.u32 %v121, 4294901760
    %v203 = vsub.f32 %v121, %v202
    %v204 = vand.u32 %v203, 4294901760
    %v205 = vsub.f32 %v203, %v204
    %v206 = vand.u32 %v205, 4294901760
    %207 = vmatmul.mubr.f32.gmra.mrb[0].mxu0 %v206
    %v208 = vpop.f32.mrb[0].mxu0
    %v209 = vadd.f32 %v114, %v208
    %v210 = vpop.f32.mrb[0].mxu0
    %211 = vdwg.mxu0
    %212 = vmatprep.subr.mxu0 0.0
    %v213 = vand.u32 %v105, 4294901760
    %v214 = vsub.f32 %v105, %v213
    %v215 = vand.u32 %v214, 4294901760
    %v216 = vsub.f32 %v214, %v215
    %v217 = vand.u32 %v216, 4294901760
    %218 = vmatpush1.msra.mxu0 %v217
    %219 = vmatprep.subr.mxu0 0.0
    %v220 = vand.u32 %v106, 4294901760
    %v221 = vsub.f32 %v106, %v220
    %v222 = vand.u32 %v221, 4294901760
    %v223 = vsub.f32 %v221, %v222
    %v224 = vand.u32 %v223, 4294901760
    %225 = vmatpush1.msra.mxu0 %v224
    %226 = vmatprep.subr.mxu0 0.0
    %v227 = vand.u32 %v107, 4294901760
    %v228 = vsub.f32 %v107, %v227
    %v229 = vand.u32 %v228, 4294901760
    %v230 = vsub.f32 %v228, %v229
    %v231 = vand.u32 %v230, 4294901760
    %232 = vmatpush1.msra.mxu0 %v231
    %233 = vmatprep.subr.mxu0 0.0
    %v234 = vand.u32 %v108, 4294901760
    %v235 = vsub.f32 %v108, %v234
    %v236 = vand.u32 %v235, 4294901760
    %v237 = vsub.f32 %v235, %v236
    %v238 = vand.u32 %v237, 4294901760
    %239 = vmatpush1.msra.mxu0 %v238
    %240 = vmatprep.subr.mxu0 0.0
    %241 = vmatpush1.msra.mxu0 0.0
    %242 = vmatprep.subr.mxu0 0.0
    %243 = vmatpush1.msra.mxu0 0.0
    %244 = vmatprep.subr.mxu0 0.0
    %245 = vmatpush1.msra.mxu0 0.0
    %246 = vmatprep.subr.mxu0 0.0
    %247 = vmatpush1.msra.mxu0 0.0
    %248 = vmatprep.subr.mxu0 0.0
    %249 = vmatpush1.msra.mxu0 0.0
    %250 = vmatprep.subr.mxu0 0.0
    %251 = vmatpush1.msra.mxu0 0.0
    %252 = vmatprep.subr.mxu0 0.0
    %253 = vmatpush1.msra.mxu0 0.0
    %254 = vmatprep.subr.mxu0 0.0
    %255 = vmatpush1.msra.mxu0 0.0
    %256 = vmatprep.subr.mxu0 0.0
    %257 = vmatpush1.msra.mxu0 0.0
    %258 = vmatprep.subr.mxu0 0.0
    %259 = vmatpush1.msra.mxu0 0.0
    %260 = vmatprep.subr.mxu0 0.0
    %261 = vmatpush1.msra.mxu0 0.0
    %262 = vmatprep.subr.mxu0 0.0
    %263 = vmatpush1.msra.mxu0 0.0
    %264 = vmatprep.subr.mxu0 0.0
    %265 = vmatpush1.msra.mxu0 0.0
    %266 = vmatprep.subr.mxu0 0.0
    %267 = vmatpush1.msra.mxu0 0.0
    %268 = vmatprep.subr.mxu0 0.0
    %269 = vmatpush1.msra.mxu0 0.0
    %270 = vmatprep.subr.mxu0 0.0
    %271 = vmatpush1.msra.mxu0 0.0
    %272 = vmatprep.subr.mxu0 0.0
    %273 = vmatpush1.msra.mxu0 0.0
    %274 = vmatprep.subr.mxu0 0.0
    %275 = vmatpush1.msra.mxu0 0.0
    %276 = vmatprep.subr.mxu0 0.0
    %277 = vmatpush1.msra.mxu0 0.0
    %278 = vmatprep.subr.mxu0 0.0
    %279 = vmatpush1.msra.mxu0 0.0
    %280 = vmatprep.subr.mxu0 0.0
    %281 = vmatpush1.msra.mxu0 0.0
    %282 = vmatprep.subr.mxu0 0.0
    %283 = vmatpush1.msra.mxu0 0.0
    %284 = vmatprep.subr.mxu0 0.0
    %285 = vmatpush1.msra.mxu0 0.0
    %286 = vmatprep.subr.mxu0 0.0
    %287 = vmatpush1.msra.mxu0 0.0
    %288 = vmatprep.subr.mxu0 0.0
    %289 = vmatpush1.msra.mxu0 0.0
    %290 = vmatprep.subr.mxu0 0.0
    %291 = vmatpush1.msra.mxu0 0.0
    %292 = vmatprep.subr.mxu0 0.0
    %293 = vmatpush1.msra.mxu0 0.0
    %294 = vmatprep.subr.mxu0 0.0
    %295 = vmatpush1.msra.mxu0 0.0
    %296 = vmatprep.mubr.f32.mxu0 0.0
    %v297 = vand.u32 %v118, 4294901760
    %298 = vmatmul.mubr.f32.gmra.mrb[0].mxu0 %v297
    %v299 = vpop.f32.mrb[0].mxu0
    %v300 = vadd.f32 %v199, %v299
    %v301 = vpop.f32.mrb[0].mxu0
    %302 = vmatprep.mubr.f32.mxu0 0.0
    %v303 = vand.u32 %v121, 4294901760
    %304 = vmatmul.mubr.f32.gmra.mrb[0].mxu0 %v303
    %v305 = vpop.f32.mrb[0].mxu0
    %v306 = vadd.f32 %v209, %v305
    %v307 = vpop.f32.mrb[0].mxu0
    %308 = vdwg.mxu0
    %309 = vmatprep.subr.mxu0 0.0
    %v310 = vand.u32 %v105, 4294901760
    %v311 = vsub.f32 %v105, %v310
    %312 = vmatpush1.msra.mxu0 %v311
    %313 = vmatprep.subr.mxu0 0.0
    %v314 = vand.u32 %v106, 4294901760
    %v315 = vsub.f32 %v106, %v314
    %316 = vmatpush1.msra.mxu0 %v315
    %317 = vmatprep.subr.mxu0 0.0
    %v318 = vand.u32 %v107, 4294901760
    %v319 = vsub.f32 %v107, %v318
    %320 = vmatpush1.msra.mxu0 %v319
    %321 = vmatprep.subr.mxu0 0.0
    %v322 = vand.u32 %v108, 4294901760
    %v323 = vsub.f32 %v108, %v322
    %324 = vmatpush1.msra.mxu0 %v323
    %325 = vmatprep.subr.mxu0 0.0
    %326 = vmatpush1.msra.mxu0 0.0
    %327 = vmatprep.subr.mxu0 0.0
    %328 = vmatpush1.msra.mxu0 0.0
    %329 = vmatprep.subr.mxu0 0.0
    %330 = vmatpush1.msra.mxu0 0.0
    %331 = vmatprep.subr.mxu0 0.0
    %332 = vmatpush1.msra.mxu0 0.0
    %333 = vmatprep.subr.mxu0 0.0
    %334 = vmatpush1.msra.mxu0 0.0
    %335 = vmatprep.subr.mxu0 0.0
    %336 = vmatpush1.msra.mxu0 0.0
    %337 = vmatprep.subr.mxu0 0.0
    %338 = vmatpush1.msra.mxu0 0.0
    %339 = vmatprep.subr.mxu0 0.0
    %340 = vmatpush1.msra.mxu0 0.0
    %341 = vmatprep.subr.mxu0 0.0
    %342 = vmatpush1.msra.mxu0 0.0
    %343 = vmatprep.subr.mxu0 0.0
    %344 = vmatpush1.msra.mxu0 0.0
    %345 = vmatprep.subr.mxu0 0.0
    %346 = vmatpush1.msra.mxu0 0.0
    %347 = vmatprep.subr.mxu0 0.0
    %348 = vmatpush1.msra.mxu0 0.0
    %349 = vmatprep.subr.mxu0 0.0
    %350 = vmatpush1.msra.mxu0 0.0
    %351 = vmatprep.subr.mxu0 0.0
    %352 = vmatpush1.msra.mxu0 0.0
    %353 = vmatprep.subr.mxu0 0.0
    %354 = vmatpush1.msra.mxu0 0.0
    %355 = vmatprep.subr.mxu0 0.0
    %356 = vmatpush1.msra.mxu0 0.0
    %357 = vmatprep.subr.mxu0 0.0
    %358 = vmatpush1.msra.mxu0 0.0
    %359 = vmatprep.subr.mxu0 0.0
    %360 = vmatpush1.msra.mxu0 0.0
    %361 = vmatprep.subr.mxu0 0.0
    %362 = vmatpush1.msra.mxu0 0.0
    %363 = vmatprep.subr.mxu0 0.0
    %364 = vmatpush1.msra.mxu0 0.0
    %365 = vmatprep.subr.mxu0 0.0
    %366 = vmatpush1.msra.mxu0 0.0
    %367 = vmatprep.subr.mxu0 0.0
    %368 = vmatpush1.msra.mxu0 0.0
    %369 = vmatprep.subr.mxu0 0.0
    %370 = vmatpush1.msra.mxu0 0.0
    %371 = vmatprep.subr.mxu0 0.0
    %372 = vmatpush1.msra.mxu0 0.0
    %373 = vmatprep.subr.mxu0 0.0
    %374 = vmatpush1.msra.mxu0 0.0
    %375 = vmatprep.subr.mxu0 0.0
    %376 = vmatpush1.msra.mxu0 0.0
    %377 = vmatprep.subr.mxu0 0.0
    %378 = vmatpush1.msra.mxu0 0.0
    %379 = vmatprep.subr.mxu0 0.0
    %380 = vmatpush1.msra.mxu0 0.0
    %381 = vmatprep.mubr.f32.mxu0 0.0
    %v382 = vand.u32 %v118, 4294901760
    %v383 = vsub.f32 %v118, %v382
    %384 = vmatmul.mubr.f32.gmra.mrb[0].mxu0 %v383
    %v385 = vpop.f32.mrb[0].mxu0
    %v386 = vadd.f32 %v300, %v385
    %v387 = vpop.f32.mrb[0].mxu0
    %388 = vmatprep.mubr.f32.mxu0 0.0
    %v389 = vand.u32 %v121, 4294901760
    %v390 = vsub.f32 %v121, %v389
    %391 = vmatmul.mubr.f32.gmra.mrb[0].mxu0 %v390
    %v392 = vpop.f32.mrb[0].mxu0
    %v393 = vadd.f32 %v306, %v392
    %v394 = vpop.f32.mrb[0].mxu0
    %395 = vdwg.mxu0
    %396 = vmatprep.subr.mxu0 0.0
    %v397 = vand.u32 %v105, 4294901760
    %398 = vmatpush1.msra.mxu0 %v397
    %399 = vmatprep.subr.mxu0 0.0
    %v400 = vand.u32 %v106, 4294901760
    %401 = vmatpush1.msra.mxu0 %v400
    %402 = vmatprep.subr.mxu0 0.0
    %v403 = vand.u32 %v107, 4294901760
    %404 = vmatpush1.msra.mxu0 %v403
    %405 = vmatprep.subr.mxu0 0.0
    %v406 = vand.u32 %v108, 4294901760
    %407 = vmatpush1.msra.mxu0 %v406
    %408 = vmatprep.subr.mxu0 0.0
    %409 = vmatpush1.msra.mxu0 0.0
    %410 = vmatprep.subr.mxu0 0.0
    %411 = vmatpush1.msra.mxu0 0.0
    %412 = vmatprep.subr.mxu0 0.0
    %413 = vmatpush1.msra.mxu0 0.0
    %414 = vmatprep.subr.mxu0 0.0
    %415 = vmatpush1.msra.mxu0 0.0
    %416 = vmatprep.subr.mxu0 0.0
    %417 = vmatpush1.msra.mxu0 0.0
    %418 = vmatprep.subr.mxu0 0.0
    %419 = vmatpush1.msra.mxu0 0.0
    %420 = vmatprep.subr.mxu0 0.0
    %421 = vmatpush1.msra.mxu0 0.0
    %422 = vmatprep.subr.mxu0 0.0
    %423 = vmatpush1.msra.mxu0 0.0
    %424 = vmatprep.subr.mxu0 0.0
    %425 = vmatpush1.msra.mxu0 0.0
    %426 = vmatprep.subr.mxu0 0.0
    %427 = vmatpush1.msra.mxu0 0.0
    %428 = vmatprep.subr.mxu0 0.0
    %429 = vmatpush1.msra.mxu0 0.0
    %430 = vmatprep.subr.mxu0 0.0
    %431 = vmatpush1.msra.mxu0 0.0
    %432 = vmatprep.subr.mxu0 0.0
    %433 = vmatpush1.msra.mxu0 0.0
    %434 = vmatprep.subr.mxu0 0.0
    %435 = vmatpush1.msra.mxu0 0.0
    %436 = vmatprep.subr.mxu0 0.0
    %437 = vmatpush1.msra.mxu0 0.0
    %438 = vmatprep.subr.mxu0 0.0
    %439 = vmatpush1.msra.mxu0 0.0
    %440 = vmatprep.subr.mxu0 0.0
    %441 = vmatpush1.msra.mxu0 0.0
    %442 = vmatprep.subr.mxu0 0.0
    %443 = vmatpush1.msra.mxu0 0.0
    %444 = vmatprep.subr.mxu0 0.0
    %445 = vmatpush1.msra.mxu0 0.0
    %446 = vmatprep.subr.mxu0 0.0
    %447 = vmatpush1.msra.mxu0 0.0
    %448 = vmatprep.subr.mxu0 0.0
    %449 = vmatpush1.msra.mxu0 0.0
    %450 = vmatprep.subr.mxu0 0.0
    %451 = vmatpush1.msra.mxu0 0.0
    %452 = vmatprep.subr.mxu0 0.0
    %453 = vmatpush1.msra.mxu0 0.0
    %454 = vmatprep.subr.mxu0 0.0
    %455 = vmatpush1.msra.mxu0 0.0
    %456 = vmatprep.subr.mxu0 0.0
    %457 = vmatpush1.msra.mxu0 0.0
    %458 = vmatprep.subr.mxu0 0.0
    %459 = vmatpush1.msra.mxu0 0.0
    %460 = vmatprep.subr.mxu0 0.0
    %461 = vmatpush1.msra.mxu0 0.0
    %462 = vmatprep.subr.mxu0 0.0
    %463 = vmatpush1.msra.mxu0 0.0
    %464 = vmatprep.mubr.f32.mxu0 0.0
    %v465 = vand.u32 %v118, 4294901760
    %v466 = vsub.f32 %v118, %v465
    %v467 = vand.u32 %v466, 4294901760
    %468 = vmatmul.mubr.f32.gmra.mrb[0].mxu0 %v467
    %v469 = vpop.f32.mrb[0].mxu0
    %v470 = vadd.f32 %v386, %v469
    %v471 = vpop.f32.mrb[0].mxu0
    %472 = vmatprep.mubr.f32.mxu0 0.0
    %v473 = vand.u32 %v121, 4294901760
    %v474 = vsub.f32 %v121, %v473
    %v475 = vand.u32 %v474, 4294901760
    %476 = vmatmul.mubr.f32.gmra.mrb[0].mxu0 %v475
    %v477 = vpop.f32.mrb[0].mxu0
    %v478 = vadd.f32 %v393, %v477
    %v479 = vpop.f32.mrb[0].mxu0
    %480 = vdwg.mxu0
    %481 = vmatprep.subr.mxu0 0.0
    %v482 = vand.u32 %v105, 4294901760
    %v483 = vsub.f32 %v105, %v482
    %v484 = vand.u32 %v483, 4294901760
    %485 = vmatpush1.msra.mxu0 %v484
    %486 = vmatprep.subr.mxu0 0.0
    %v487 = vand.u32 %v106, 4294901760
    %v488 = vsub.f32 %v106, %v487
    %v489 = vand.u32 %v488, 4294901760
    %490 = vmatpush1.msra.mxu0 %v489
    %491 = vmatprep.subr.mxu0 0.0
    %v492 = vand.u32 %v107, 4294901760
    %v493 = vsub.f32 %v107, %v492
    %v494 = vand.u32 %v493, 4294901760
    %495 = vmatpush1.msra.mxu0 %v494
    %496 = vmatprep.subr.mxu0 0.0
    %v497 = vand.u32 %v108, 4294901760
    %v498 = vsub.f32 %v108, %v497
    %v499 = vand.u32 %v498, 4294901760
    %500 = vmatpush1.msra.mxu0 %v499
    %501 = vmatprep.subr.mxu0 0.0
    %502 = vmatpush1.msra.mxu0 0.0
    %503 = vmatprep.subr.mxu0 0.0
    %504 = vmatpush1.msra.mxu0 0.0
    %505 = vmatprep.subr.mxu0 0.0
    %506 = vmatpush1.msra.mxu0 0.0
    %507 = vmatprep.subr.mxu0 0.0
    %508 = vmatpush1.msra.mxu0 0.0
    %509 = vmatprep.subr.mxu0 0.0
    %510 = vmatpush1.msra.mxu0 0.0
    %511 = vmatprep.subr.mxu0 0.0
    %512 = vmatpush1.msra.mxu0 0.0
    %513 = vmatprep.subr.mxu0 0.0
    %514 = vmatpush1.msra.mxu0 0.0
    %515 = vmatprep.subr.mxu0 0.0
    %516 = vmatpush1.msra.mxu0 0.0
    %517 = vmatprep.subr.mxu0 0.0
    %518 = vmatpush1.msra.mxu0 0.0
    %519 = vmatprep.subr.mxu0 0.0
    %520 = vmatpush1.msra.mxu0 0.0
    %521 = vmatprep.subr.mxu0 0.0
    %522 = vmatpush1.msra.mxu0 0.0
    %523 = vmatprep.subr.mxu0 0.0
    %524 = vmatpush1.msra.mxu0 0.0
    %525 = vmatprep.subr.mxu0 0.0
    %526 = vmatpush1.msra.mxu0 0.0
    %527 = vmatprep.subr.mxu0 0.0
    %528 = vmatpush1.msra.mxu0 0.0
    %529 = vmatprep.subr.mxu0 0.0
    %530 = vmatpush1.msra.mxu0 0.0
    %531 = vmatprep.subr.mxu0 0.0
    %532 = vmatpush1.msra.mxu0 0.0
    %533 = vmatprep.subr.mxu0 0.0
    %534 = vmatpush1.msra.mxu0 0.0
    %535 = vmatprep.subr.mxu0 0.0
    %536 = vmatpush1.msra.mxu0 0.0
    %537 = vmatprep.subr.mxu0 0.0
    %538 = vmatpush1.msra.mxu0 0.0
    %539 = vmatprep.subr.mxu0 0.0
    %540 = vmatpush1.msra.mxu0 0.0
    %541 = vmatprep.subr.mxu0 0.0
    %542 = vmatpush1.msra.mxu0 0.0
    %543 = vmatprep.subr.mxu0 0.0
    %544 = vmatpush1.msra.mxu0 0.0
    %545 = vmatprep.subr.mxu0 0.0
    %546 = vmatpush1.msra.mxu0 0.0
    %547 = vmatprep.subr.mxu0 0.0
    %548 = vmatpush1.msra.mxu0 0.0
    %549 = vmatprep.subr.mxu0 0.0
    %550 = vmatpush1.msra.mxu0 0.0
    %551 = vmatprep.subr.mxu0 0.0
    %552 = vmatpush1.msra.mxu0 0.0
    %553 = vmatprep.subr.mxu0 0.0
    %554 = vmatpush1.msra.mxu0 0.0
    %555 = vmatprep.subr.mxu0 0.0
    %556 = vmatpush1.msra.mxu0 0.0
    %557 = vmatprep.mubr.f32.mxu0 0.0
    %v558 = vand.u32 %v118, 4294901760
    %559 = vmatmul.mubr.f32.gmra.mrb[0].mxu0 %v558
    %v560 = vpop.f32.mrb[0].mxu0
    %v561 = vadd.f32 %v470, %v560
    %v562 = vpop.f32.mrb[0].mxu0
    %563 = vmatprep.mubr.f32.mxu0 0.0
    %v564 = vand.u32 %v121, 4294901760
    %565 = vmatmul.mubr.f32.gmra.mrb[0].mxu0 %v564
    %v566 = vpop.f32.mrb[0].mxu0
    %v567 = vadd.f32 %v478, %v566
    %v568 = vpop.f32.mrb[0].mxu0
    %569 = vdwg.mxu0
    %570 = vmatprep.subr.mxu0 0.0
    %v571 = vand.u32 %v105, 4294901760
    %572 = vmatpush1.msra.mxu0 %v571
    %573 = vmatprep.subr.mxu0 0.0
    %v574 = vand.u32 %v106, 4294901760
    %575 = vmatpush1.msra.mxu0 %v574
    %576 = vmatprep.subr.mxu0 0.0
    %v577 = vand.u32 %v107, 4294901760
    %578 = vmatpush1.msra.mxu0 %v577
    %579 = vmatprep.subr.mxu0 0.0
    %v580 = vand.u32 %v108, 4294901760
    %581 = vmatpush1.msra.mxu0 %v580
    %582 = vmatprep.subr.mxu0 0.0
    %583 = vmatpush1.msra.mxu0 0.0
    %584 = vmatprep.subr.mxu0 0.0
    %585 = vmatpush1.msra.mxu0 0.0
    %586 = vmatprep.subr.mxu0 0.0
    %587 = vmatpush1.msra.mxu0 0.0
    %588 = vmatprep.subr.mxu0 0.0
    %589 = vmatpush1.msra.mxu0 0.0
    %590 = vmatprep.subr.mxu0 0.0
    %591 = vmatpush1.msra.mxu0 0.0
    %592 = vmatprep.subr.mxu0 0.0
    %593 = vmatpush1.msra.mxu0 0.0
    %594 = vmatprep.subr.mxu0 0.0
    %595 = vmatpush1.msra.mxu0 0.0
    %596 = vmatprep.subr.mxu0 0.0
    %597 = vmatpush1.msra.mxu0 0.0
    %598 = vmatprep.subr.mxu0 0.0
    %599 = vmatpush1.msra.mxu0 0.0
    %600 = vmatprep.subr.mxu0 0.0
    %601 = vmatpush1.msra.mxu0 0.0
    %602 = vmatprep.subr.mxu0 0.0
    %603 = vmatpush1.msra.mxu0 0.0
    %604 = vmatprep.subr.mxu0 0.0
    %605 = vmatpush1.msra.mxu0 0.0
    %606 = vmatprep.subr.mxu0 0.0
    %607 = vmatpush1.msra.mxu0 0.0
    %608 = vmatprep.subr.mxu0 0.0
    %609 = vmatpush1.msra.mxu0 0.0
    %610 = vmatprep.subr.mxu0 0.0
    %611 = vmatpush1.msra.mxu0 0.0
    %612 = vmatprep.subr.mxu0 0.0
    %613 = vmatpush1.msra.mxu0 0.0
    %614 = vmatprep.subr.mxu0 0.0
    %615 = vmatpush1.msra.mxu0 0.0
    %616 = vmatprep.subr.mxu0 0.0
    %617 = vmatpush1.msra.mxu0 0.0
    %618 = vmatprep.subr.mxu0 0.0
    %619 = vmatpush1.msra.mxu0 0.0
    %620 = vmatprep.subr.mxu0 0.0
    %621 = vmatpush1.msra.mxu0 0.0
    %622 = vmatprep.subr.mxu0 0.0
    %623 = vmatpush1.msra.mxu0 0.0
    %624 = vmatprep.subr.mxu0 0.0
    %625 = vmatpush1.msra.mxu0 0.0
    %626 = vmatprep.subr.mxu0 0.0
    %627 = vmatpush1.msra.mxu0 0.0
    %628 = vmatprep.subr.mxu0 0.0
    %629 = vmatpush1.msra.mxu0 0.0
    %630 = vmatprep.subr.mxu0 0.0
    %631 = vmatpush1.msra.mxu0 0.0
    %632 = vmatprep.subr.mxu0 0.0
    %633 = vmatpush1.msra.mxu0 0.0
    %634 = vmatprep.subr.mxu0 0.0
    %635 = vmatpush1.msra.mxu0 0.0
    %636 = vmatprep.subr.mxu0 0.0
    %637 = vmatpush1.msra.mxu0 0.0
    %638 = vmatprep.mubr.f32.mxu0 0.0
    %v639 = vand.u32 %v118, 4294901760
    %640 = vmatmul.mubr.f32.gmra.mrb[0].mxu0 %v639
    %v641 = vpop.f32.mrb[0].mxu0
    %v642 = vadd.f32 %v561, %v641
    %v643 = vpop.f32.mrb[0].mxu0
    %644 = vmatprep.mubr.f32.mxu0 0.0
    %v645 = vand.u32 %v121, 4294901760
    %646 = vmatmul.mubr.f32.gmra.mrb[0].mxu0 %v645
    %v647 = vpop.f32.mrb[0].mxu0
    %v648 = vadd.f32 %v567, %v647
    %v649 = vpop.f32.mrb[0].mxu0
    %650 = vdwg.mxu0
    %vm651 = vcmask 785408
    %652 = vst.msk [vmem:[#allocation8] sm:$0xff] %vm651, %v642
    %653 = vst.msk [vmem:[#allocation8 + $0x8] sm:$0xff] %vm651, %v648
    // Predicated region
    $region34: #{tpu_custom_call.1} parent=1 // pred_check
      _
    $region35: #{tpu_custom_call.1} parent=1 // pred_check_branch
      %655 = sbr.rel (0) target = $region37
    $region36: #{tpu_custom_call.1} parent=1 // pred_region
      %s657 = ssub.s32 256, 256
      %658 = vsyncadd [#allocation5], %s657
      %s659 = sshll.u32 [#allocation8], 4
      %s660 = int_to_ptr.vmem [resolvable:$true] %s659
      %665 = dma.vmem_to_hbm [thread:$0]  %s660, 256, %s5, [#allocation5], 128, 128, 8
    $region37: #{tpu_custom_call.1} parent=1 // pred_fallthru
      _
    // Predicated region
    $region38: #{tpu_custom_call.1} parent=1 // pred_check
      _
    $region39: #{tpu_custom_call.1} parent=1 // pred_check_branch
      %667 = sbr.rel (0) target = $region41
    $region40: #{tpu_custom_call.1} parent=1 // pred_region
      %668 = dma.done [#allocation5], 256
    $region41: #{tpu_custom_call.1} parent=1 // pred_fallthru
      _
    %669 = vsyncpa [#allocation4], 1
    %670 = vsyncpa [#allocation7], 1
    %671 = vsyncpa [#allocation5], 1

</llo_original>
